<compile_context>
chip_gen: v7x
topology: tpu7x:2x2x1
jax: 0.10.0
libtpu: 0.0.40
codegen_flags: <defaults>
</compile_context>

<pallas_src>
from functools import partial

import numpy as np
import jax
import jax.numpy as jnp
from jax.experimental import pallas as pl
from jax.experimental.pallas import tpu as pltpu


# ------------------------------ helpers ----------------------------------

def _round_up(x, m):
    return ((x + m - 1) // m) * m


def _choose_bn(N, V, L, vmem_budget_bytes):
    """Batch-block size: big enough to amortize grid-step overhead, small
    enough to fit the VMEM budget, and keeping >=2 grid steps when N>=2."""
    vp = _round_up(V, 8)
    lp = _round_up(L, 128)
    per_batch = 2 * 2 * vp * lp * 4          # x + out, double-buffered, f32, vreg-padded
    cap = max(1, vmem_budget_bytes // per_batch)
    bn = int(min(cap, max(1, -(-N // 2))))   # ceil(N/2) keeps 2 steps for megacore
    while bn > 1 and N % bn:                 # make blocks divide N exactly (no tail)
        bn -= 1
    return bn


# ----------------------------- Pallas kernel ------------------------------

def _make_rd_kernel(fused: bool, node_size: int, bn: int, compute_dtype):
    V = node_size

    def kernel(ind_ref, x_ref, w_ref, b_ref, o_ref):
        # ind_ref : (N,)        SMEM  time-bucket per batch element
        # x_ref   : (BN, V, L)  VMEM  f32
        # w_ref   : (T, R, V)   VMEM  resident fused Laplacian stack
        # b_ref   : (T, R, 1)   VMEM  resident fused bias stack (f32)
        # o_ref   : (BN, V, L)  VMEM  f32
        blk = pl.program_id(0)

        @pl.loop(0, bn, unroll=(bn <= 8))
        def _(n):
            t = ind_ref[blk * bn + n]                    # scalar gather from SMEM
            x32 = x_ref[n]                               # (V, L) f32
            xm = x32.astype(compute_dtype)               # optional bf16 MXU operand
            y = jnp.dot(w_ref[t], xm,                    # single fused matmul (R, L)
                        preferred_element_type=jnp.float32) + b_ref[t]
            if fused:
                out = jnp.tanh(y[:V]) + y[V:] + x32      # tanh(reaction)+diffusion+x
            else:
                out = y + x32                            # reaction+x or diffusion+x
            o_ref[n] = out.astype(o_ref.dtype)

    return kernel


# ------------------------------ wrapper -----------------------------------

@partial(jax.jit, static_argnames=("fused",))
def _rd_pallas_call(x, ind_div, W, b, *, fused):
    N, V, L = x.shape
    T, R, _ = W.shape

    bn = _choose_bn(N, V, L, vmem_budget_bytes=16 << 20)
    grid = (N // bn,)

    kernel = _make_rd_kernel(fused, V, bn, W.dtype)

    # Real (vreg-padded) VMEM footprint: double-buffered x/out blocks plus
    # the resident W / bias stacks (counted twice, conservative on buffering).
    vp, lp, rp = _round_up(V, 8), _round_up(L, 128), _round_up(R, 8)
    x_blk = bn * vp * lp * 4
    w_res = T * rp * _round_up(V, 128) * W.dtype.itemsize
    b_res = T * rp * 128 * 4
    footprint = 2 * (2 * x_blk) + 2 * (w_res + b_res)
    vmem_limit = int(min(48 << 20, max(8 << 20, 2 * footprint)))  # v7x-safe

    flops = 2 * N * R * V * L + 4 * N * V * L
    transcendentals = N * V * L if fused else 0
    bytes_accessed = (4 * 2 * N * V * L
                      + T * R * V * W.dtype.itemsize
                      + T * R * 4 + N * 4)

    return pl.pallas_call(
        kernel,
        out_shape=jax.ShapeDtypeStruct((N, V, L), x.dtype),
        grid_spec=pltpu.PrefetchScalarGridSpec(
            num_scalar_prefetch=1,
            grid=grid,
            in_specs=[
                pl.BlockSpec((bn, V, L), lambda i, ind: (i, 0, 0)),   # x blocks
                pl.BlockSpec((T, R, V), lambda i, ind: (0, 0, 0)),    # resident W
                pl.BlockSpec((T, R, 1), lambda i, ind: (0, 0, 0)),    # resident bias
            ],
            out_specs=pl.BlockSpec((bn, V, L), lambda i, ind: (i, 0, 0)),
        ),
        compiler_params=pltpu.CompilerParams(
            dimension_semantics=("parallel",),
            vmem_limit_bytes=vmem_limit),
        cost_estimate=pl.CostEstimate(
            flops=flops, transcendentals=transcendentals,
            bytes_accessed=bytes_accessed),
    )(ind_div, x, W, b)


# ----------------------------- Module (glue) ------------------------------

class ReactionDiffusionNatureLayer:
    """JAX / Pallas port of reaction_diffusion_nature_layer (forward only)."""

    def __init__(self, key, up_or_down, resolution, mat, node_size):
        self.resolution = resolution
        self.node_size = node_size
        self.up = bool(up_or_down[0])
        self.down = bool(up_or_down[1])

        i_idx, j_idx = np.nonzero(mat)
        self.edge_size = len(i_idx)
        self.i_idx = jnp.asarray(i_idx, dtype=jnp.int32)
        self.j_idx = jnp.asarray(j_idx, dtype=jnp.int32)

        T = int(288 / resolution)
        k1, k2, k3, k4 = jax.random.split(key, 4)
        # Same shapes / scales as the PyTorch init (randn-based, synthetic).
        self.weight_react = jax.random.normal(k1, (T, self.edge_size), jnp.float32) / 10.0
        self.weight_diff = jax.random.normal(k2, (T, self.edge_size), jnp.float32) / 1000.0
        self.bias_reaction = jax.random.normal(k3, (T, node_size), jnp.float32) / 10.0
        self.bias_diffusion = jax.random.normal(k4, (T, node_size), jnp.float32) / 10.0

        self._stack_cache = {}   # (up, down, dtype) -> (W_stack, b_stack, fused)

    # sparse COO -> dense Laplacian-style weights, one per TIME BUCKET (T,V,V)
    def _dense_laplacians(self, rows, cols, vals_stack):
        V = self.node_size

        def build(vals):
            Wm = jnp.zeros((V, V), jnp.float32).at[rows, cols].add(vals)
            # torch.sum(W[None], dim=1)[0, :] == column sums of W
            return jnp.diag(jnp.sum(Wm, axis=0)) - Wm

        return jax.vmap(build)(vals_stack)                    # (T, V, V)

    def _get_stacks(self, up, down, mxu_dtype):
        key = (up, down, jnp.dtype(mxu_dtype).name)
        if key in self._stack_cache:
            return self._stack_cache[key]

        parts_W, parts_b = [], []
        if up:
            parts_W.append(self._dense_laplacians(self.i_idx, self.j_idx,
                                                  self.weight_react))
            parts_b.append(self.bias_reaction)
        if down:
            parts_W.append(self._dense_laplacians(self.j_idx, self.i_idx,
                                                  self.weight_diff))
            parts_b.append(self.bias_diffusion)

        W = jnp.concatenate(parts_W, axis=1).astype(mxu_dtype)   # (T, R, V)
        b = jnp.concatenate(parts_b, axis=1)[:, :, None]         # (T, R, 1) f32
        fused = up and down
        self._stack_cache[key] = (W, b, fused)
        return W, b, fused

    def forward(self, inputs, ind, mxu_dtype=jnp.float32):
        # inputs: (N, C, V, L); ind: python list / array of length N
        if not self.up and not self.down:
            print('bad input')
            return None

        x = inputs[:, 0, :, :]                                   # (N, V, L)
        ind_div = jnp.asarray(np.asarray(ind) // self.resolution,
                              dtype=jnp.int32)                   # (N,)

        W, b, fused = self._get_stacks(self.up, self.down, mxu_dtype)
        return _rd_pallas_call(x, ind_div, W, b, fused=fused)


# ------------------------------ reference ---------------------------------

def _reference_forward(layer, inputs, ind):
    x = inputs[:, 0, :, :]
    idx = [int(i) // layer.resolution for i in ind]
    V = layer.node_size

    def dense(rows, cols, vals):
        Wm = jnp.zeros((V, V), jnp.float32).at[rows, cols].add(vals)
        return jnp.diag(jnp.sum(Wm, axis=0)) - Wm

    A_r = jnp.stack([dense(layer.i_idx, layer.j_idx, layer.weight_react[t]) for t in idx])
    A_d = jnp.stack([dense(layer.j_idx, layer.i_idx, layer.weight_diff[t]) for t in idx])
    b_r = layer.bias_reaction[jnp.asarray(idx)][:, :, None]
    b_d = layer.bias_diffusion[jnp.asarray(idx)][:, :, None]

    reaction = jnp.einsum('nvl,nwv->nwl', x, A_r) + b_r
    diffusion = jnp.einsum('nvl,nwv->nwl', x, A_d) + b_d
    if layer.up and layer.down:
        return jnp.tanh(reaction) + diffusion + x
    elif layer.up:
        return reaction + x
    else:
        return diffusion + x


# -------------------------------- main -------------------------------------

if __name__ == "__main__":
    # Small deterministic shapes
    N, C, V, L = 2, 4, 16, 16
    resolution = 36                        # 288 / 36 = 8 time buckets

    # Deterministic adjacency pattern (ring-ish graph)
    mat = np.zeros((V, V), dtype=np.int32)
    for v in range(V):
        mat[v, (v + 1) % V] = 1
        mat[v, (v + 3) % V] = 1

    key = jax.random.PRNGKey(0)
    k_param, k_inp = jax.random.split(key)

    layer = ReactionDiffusionNatureLayer(
        k_param, up_or_down=(True, True), resolution=resolution,
        mat=mat, node_size=V)

    inputs = jax.random.normal(k_inp, (N, C, V, L), dtype=jnp.float32)
    ind = [0, 40]  # time indices, one per batch element

    # Main path: up & down (f32 MXU operands — exact match)
    out = jax.block_until_ready(layer.forward(inputs, ind))
    ref = _reference_forward(layer, inputs, ind)
    np.testing.assert_allclose(np.asarray(out), np.asarray(ref),
                               rtol=1e-5, atol=1e-5)

    # Single-branch kernels (up-only / down-only)
    for flags in ((True, False), (False, True)):
        layer.up, layer.down = flags
        out_b = jax.block_until_ready(layer.forward(inputs, ind))
        ref_b = _reference_forward(layer, inputs, ind)
        np.testing.assert_allclose(np.asarray(out_b), np.asarray(ref_b),
                                   rtol=1e-5, atol=1e-5)

    # bf16 MXU-operand path (v6e/v7x lever): f32 accumulate + f32 epilogue
    layer.up, layer.down = True, True
    out_bf = jax.block_until_ready(layer.forward(inputs, ind,
                                                 mxu_dtype=jnp.bfloat16))
    np.testing.assert_allclose(np.asarray(out_bf), np.asarray(ref),
                               rtol=2e-2, atol=2e-2)

    print("KERNEL_OK")
</pallas_src>

<mosaic_0001>
module attributes {stable_mosaic.version = 11 : i64} {
  func.func @kernel(%arg0: i32, %arg1: memref<2xi32, #tpu.memory_space<smem>>, %arg2: memref<1x16x16xf32, #tpu.memory_space<vmem>>, %arg3: memref<8x32x16xf32, #tpu.memory_space<vmem>>, %arg4: memref<8x32x1xf32, #tpu.memory_space<vmem>>, %arg5: memref<1x16x16xf32, #tpu.memory_space<vmem>>) attributes {dimension_semantics = [#tpu.dimension_semantics<parallel>], iteration_bounds = array<i64: 2>, scalar_prefetch = 1 : i64, scratch_operands = 0 : i64, tpu.core_type = #tpu.core_type<tc>, window_params = [{transform_indices = @transform_0, window_bounds = array<i64: 1, 16, 16>}, {pipeline_mode = #tpu.pipeline_mode<synchronous>, transform_indices = @transform_1, window_bounds = array<i64: 8, 32, 16>}, {pipeline_mode = #tpu.pipeline_mode<synchronous>, transform_indices = @transform_2, window_bounds = array<i64: 8, 32, 1>}, {transform_indices = @transform_3, window_bounds = array<i64: 1, 16, 16>}]} {
    %c0_i32 = arith.constant 0 : i32
    %c1_i32 = arith.constant 1 : i32
    %0 = arith.muli %c0_i32, %c1_i32 : i32
    %c0_i32_0 = arith.constant 0 : i32
    %1 = arith.addi %c0_i32_0, %0 : i32
    %c1_i32_1 = arith.constant 1 : i32
    %2 = arith.muli %arg0, %c1_i32_1 : i32
    %3 = arith.addi %2, %1 : i32
    %4 = arith.index_cast %3 : i32 to index
    %5 = memref.load %arg1[%4] : memref<2xi32, #tpu.memory_space<smem>>
    %6 = arith.index_cast %1 : i32 to index
    %c0 = arith.constant 0 : index
    %c0_2 = arith.constant 0 : index
    %7 = vector.load %arg2[%6, %c0, %c0_2] : memref<1x16x16xf32, #tpu.memory_space<vmem>>, vector<1x16x16xf32>
    %8 = vector.shape_cast %7 : vector<1x16x16xf32> to vector<16x16xf32>
    %9 = arith.index_cast %5 : i32 to index
    %c0_3 = arith.constant 0 : index
    %c0_4 = arith.constant 0 : index
    %10 = vector.load %arg3[%9, %c0_3, %c0_4] : memref<8x32x16xf32, #tpu.memory_space<vmem>>, vector<1x32x16xf32>
    %11 = vector.shape_cast %10 : vector<1x32x16xf32> to vector<32x16xf32>
    %cst = arith.constant dense<0.000000e+00> : vector<32x16xf32>
    %12 = tpu.matmul %11, %8, %cst {dimension_numbers = #tpu.dot_dimension_numbers<[1], [0], [0], [1], [0, 0, 1, 1], [], []>} : vector<32x16xf32>, vector<16x16xf32>, vector<32x16xf32> -> vector<32x16xf32>
    %13 = arith.index_cast %5 : i32 to index
    %c0_5 = arith.constant 0 : index
    %c0_6 = arith.constant 0 : index
    %14 = vector.load %arg4[%13, %c0_5, %c0_6] : memref<8x32x1xf32, #tpu.memory_space<vmem>>, vector<1x32x1xf32>
    %15 = vector.shape_cast %14 : vector<1x32x1xf32> to vector<32x1xf32>
    %16 = vector.broadcast %15 : vector<32x1xf32> to vector<32x16xf32>
    %17 = arith.addf %12, %16 : vector<32x16xf32>
    %18 = vector.extract_strided_slice %17 {offsets = [0, 0], sizes = [16, 16], strides = [1, 1]} : vector<32x16xf32> to vector<16x16xf32>
    %19 = math.tanh %18 : vector<16x16xf32>
    %20 = vector.extract_strided_slice %17 {offsets = [16, 0], sizes = [16, 16], strides = [1, 1]} : vector<32x16xf32> to vector<16x16xf32>
    %21 = arith.addf %19, %20 : vector<16x16xf32>
    %22 = arith.addf %21, %8 : vector<16x16xf32>
    %23 = arith.index_cast %1 : i32 to index
    %c0_7 = arith.constant 0 : index
    %c0_8 = arith.constant 0 : index
    %24 = vector.load %arg5[%23, %c0_7, %c0_8] : memref<1x16x16xf32, #tpu.memory_space<vmem>>, vector<1x16x16xf32>
    %25 = vector.shape_cast %24 : vector<1x16x16xf32> to vector<16x16xf32>
    %26 = vector.shape_cast %22 : vector<16x16xf32> to vector<1x16x16xf32>
    tpu.vector_store %arg5[%23, %c0_7, %c0_8], %26 {strides = array<i32>} : memref<1x16x16xf32, #tpu.memory_space<vmem>>, vector<1x16x16xf32>,
    %c1_i32_9 = arith.constant 1 : i32
    return
  }
  func.func @transform_0(%arg0: i32, %arg1: memref<2xi32, #tpu.memory_space<smem>>) -> (i32, i32, i32) {
    %c0_i32 = arith.constant 0 : i32
    %c0_i32_0 = arith.constant 0 : i32
    %c0_i32_1 = arith.constant 0 : i32
    return %arg0, %c0_i32, %c0_i32_0 : i32, i32, i32
  }
  func.func @transform_1(%arg0: i32, %arg1: memref<2xi32, #tpu.memory_space<smem>>) -> (i32, i32, i32) {
    %c0_i32 = arith.constant 0 : i32
    %c0_i32_0 = arith.constant 0 : i32
    %c0_i32_1 = arith.constant 0 : i32
    %c0_i32_2 = arith.constant 0 : i32
    return %c0_i32, %c0_i32_0, %c0_i32_1 : i32, i32, i32
  }
  func.func @transform_2(%arg0: i32, %arg1: memref<2xi32, #tpu.memory_space<smem>>) -> (i32, i32, i32) {
    %c0_i32 = arith.constant 0 : i32
    %c0_i32_0 = arith.constant 0 : i32
    %c0_i32_1 = arith.constant 0 : i32
    %c0_i32_2 = arith.constant 0 : i32
    return %c0_i32, %c0_i32_0, %c0_i32_1 : i32, i32, i32
  }
  func.func @transform_3(%arg0: i32, %arg1: memref<2xi32, #tpu.memory_space<smem>>) -> (i32, i32, i32) {
    %c0_i32 = arith.constant 0 : i32
    %c0_i32_0 = arith.constant 0 : i32
    %c0_i32_1 = arith.constant 0 : i32
    return %arg0, %c0_i32, %c0_i32_0 : i32, i32, i32
  }
}

</mosaic_0001>

<llo_original>
// kernel: _rd_pallas_call.1
$region0: #{_rd_pallas_call.1}
  #allocation0 [shape = 'u32[]', space=smem, size = 0x4, offset = 0x4, fixed_abs, tag = 'smem constant byte address 0x4 - core index']
  #allocation1 [shape = 'u32[144,128]{1,0:T(1,128)}', space=vmem, size = 0x12000, scoped, tag = 'internal scratch']
  #allocation2 [shape = 's32[1]{0}', space=sflag, size = 0x4, scoped, tag = 'scoped memory for _rd_pallas_call.1']
  #allocation3 [shape = 'u8[512]{0}', space=smem, size = 0x200, scoped, tag = 'prefetched SMEM operand 0']
  %s0 = inlined_call_operand.vmem [shape: s32[2], index: 0, kind: input, shape index: {}]
  %s1 = inlined_call_operand.vmem [shape: f32[2,16,16], index: 1, kind: input, shape index: {}]
  %s2 = inlined_call_operand.vmem [shape: f32[8,32,16], index: 2, kind: input, shape index: {}]
  %s3 = inlined_call_operand.vmem [shape: f32[8,32,1], index: 3, kind: input, shape index: {}]
  %s4 = inlined_call_operand.hbm [shape: f32[2,16,16], index: 4, kind: output, shape index: {}]
  %s5 = sld [smem:[#allocation0]]
  $region45: #{_rd_pallas_call.1} parent=0
    _
  %s7 = ssub.s32 1, %s5
  %s8 = scalar_select 0, %s7, %s5
  %s9 = sshll.u32 %s0, 4
  %s10 = int_to_ptr.vmem [resolvable:$true] %s9
  %12 = dma.vmem_to_smem %s10, 16, [#allocation3], [#allocation2]
  %13 = dma.done [#allocation2], 16
  %14 = sfence
  $region1: #{_rd_pallas_call.1} parent=0
    #allocation4 [shape = 'u8[16384]{0}', space=vmem, size = 0x4000, scoped, tag = 'output window, operand 0']
    #allocation5 [shape = 's32[2]{0}', space=sflag, size = 0x8, scoped, tag = 'scoped memory for _rd_pallas_call.1']
    %15 = vsyncpa [#allocation5], 0
    %s16 = scalar_lea.sflag [#allocation5], 1
    %17 = vsyncpa %s16, 0
    loop: start=0, step=1, limit=4
    $region2: #{_rd_pallas_call.1} parent=1 // loop_pre_header
      _
    $region3: #{_rd_pallas_call.1} parent=1 // loop_header
      %s19 = sphi 0, %s23
      %p20 = scmp.ge.s32.totalorder %s19, 4
      %s29 = sphi 0, %s31
      %s32 = sphi 0, %s29
      %s33 = sphi 0, %s32
      %s49 = sphi 0, %s33
      %s53 = sphi 0, %s53
      %s55 = sphi 0, %s53
      %s56 = sphi 0, %s55
      %s70 = sphi 0, %s56
      %s74 = sphi 0, %s74
      %s76 = sphi 0, %s74
      %s77 = sphi 0, %s76
      %s91 = sphi 0, %s77
      %s97 = sphi 0, %s99
      %s100 = sphi 0, %s97
      %s101 = sphi 0, %s100
      %s117 = sphi 0, %s101
    $region4: #{_rd_pallas_call.1} parent=1 // loop_header_branch
      %22 = sbr.rel (%p20) target = $region8
    $region5: #{_rd_pallas_call.1} parent=1 // loop_body
      %s24 = ssub.s32 %s19, 1
      %s25 = ssub.s32 %s19, 2
      %s26 = sadd.s32 %s19, 1
      %s27 = ssub.s32 %s19, %s26
      %p28 = scmp.eq.s32.totalorder %s27, 0
      %s30 = sadd.s32 %s29, 1
      %s31 = scalar_select %p28, %s29, %s30
      %p34 = pneg %p28
      %p35 = scmp.eq.s32.totalorder %s19, 1
      %p36 = por %p34, %p35
      %p37 = scmp.ne.s32.totalorder %s29, %s32
      %p38 = scmp.eq.s32.totalorder %s19, 0
      %p39 = por %p37, %p38
      %p40 = scmp.ne.s32.totalorder %s29, %s32
      %p41 = scmp.eq.s32.totalorder %s24, 1
      %p42 = por %p40, %p41
      %p43 = scmp.ne.s32.totalorder %s32, %s33
      %p44 = scmp.eq.s32.totalorder %s24, 0
      %p45 = por %p43, %p44
      %p46 = scmp.ne.s32.totalorder %s32, %s33
      %p47 = scmp.eq.s32.totalorder %s25, 1
      %p48 = por %p46, %p47
      %p50 = scmp.ne.s32.totalorder %s33, %s49
      %p51 = scmp.eq.s32.totalorder %s25, 0
      %p52 = por %p50, %p51
      %s54 = sadd.s32 %s53, 1
      %p57 = scmp.eq.s32.totalorder %s19, 1
      %p58 = scmp.ne.s32.totalorder %s53, %s55
      %p59 = scmp.eq.s32.totalorder %s19, 0
      %p60 = por %p58, %p59
      %p61 = scmp.ne.s32.totalorder %s53, %s55
      %p62 = scmp.eq.s32.totalorder %s24, 1
      %p63 = por %p61, %p62
      %p64 = scmp.ne.s32.totalorder %s55, %s56
      %p65 = scmp.eq.s32.totalorder %s24, 0
      %p66 = por %p64, %p65
      %p67 = scmp.ne.s32.totalorder %s55, %s56
      %p68 = scmp.eq.s32.totalorder %s25, 1
      %p69 = por %p67, %p68
      %p71 = scmp.ne.s32.totalorder %s56, %s70
      %p72 = scmp.eq.s32.totalorder %s25, 0
      %p73 = por %p71, %p72
      %s75 = sadd.s32 %s74, 1
      %p78 = scmp.eq.s32.totalorder %s19, 1
      %p79 = scmp.ne.s32.totalorder %s74, %s76
      %p80 = scmp.eq.s32.totalorder %s19, 0
      %p81 = por %p79, %p80
      %p82 = scmp.ne.s32.totalorder %s74, %s76
      %p83 = scmp.eq.s32.totalorder %s24, 1
      %p84 = por %p82, %p83
      %p85 = scmp.ne.s32.totalorder %s76, %s77
      %p86 = scmp.eq.s32.totalorder %s24, 0
      %p87 = por %p85, %p86
      %p88 = scmp.ne.s32.totalorder %s76, %s77
      %p89 = scmp.eq.s32.totalorder %s25, 1
      %p90 = por %p88, %p89
      %p92 = scmp.ne.s32.totalorder %s77, %s91
      %p93 = scmp.eq.s32.totalorder %s25, 0
      %p94 = por %p92, %p93
      %s95 = ssub.s32 %s19, %s26
      %p96 = scmp.eq.s32.totalorder %s95, 0
      %s98 = sadd.s32 %s97, 1
      %s99 = scalar_select %p96, %s97, %s98
      %p102 = pneg %p96
      %p103 = scmp.eq.s32.totalorder %s19, 1
      %p104 = por %p102, %p103
      %p105 = scmp.ne.s32.totalorder %s97, %s100
      %p106 = scmp.eq.s32.totalorder %s19, 0
      %p107 = por %p105, %p106
      %p108 = scmp.ne.s32.totalorder %s97, %s100
      %p109 = scmp.eq.s32.totalorder %s24, 1
      %p110 = por %p108, %p109
      %p111 = scmp.ne.s32.totalorder %s100, %s101
      %p112 = scmp.eq.s32.totalorder %s24, 0
      %p113 = por %p111, %p112
      %p114 = scmp.ne.s32.totalorder %s100, %s101
      %p115 = scmp.eq.s32.totalorder %s25, 1
      %p116 = por %p114, %p115
      %p118 = scmp.ne.s32.totalorder %s101, %s117
      %p119 = scmp.eq.s32.totalorder %s25, 0
      %p120 = por %p118, %p119
      %p121 = scmp.le.s32.totalorder 1, %s19
      %p122 = scmp.lt.s32.totalorder %s19, 3
      %p123 = pnand %p121, %p122
      %p124 = pneg %p123
      // Predicated region
      $region9: #{_rd_pallas_call.1} parent=5 // pred_check
        _
      $region10: #{_rd_pallas_call.1} parent=5 // pred_check_branch
        %126 = sbr.rel (%p123) target = $region12
      $region11: #{_rd_pallas_call.1} parent=5 // pred_region
        %s127 = ssub.s32 %s19, 1
        // Predicated region
        $region13: #{_rd_pallas_call.1} parent=11 // pred_check
          %p128 = pneg %p66
        $region14: #{_rd_pallas_call.1} parent=11 // pred_check_branch
          %130 = sbr.rel (%p128) target = $region16
        $region15: #{_rd_pallas_call.1} parent=11 // pred_region
          _
        $region16: #{_rd_pallas_call.1} parent=11 // pred_fallthru
          _
        // Predicated region
        $region17: #{_rd_pallas_call.1} parent=11 // pred_check
          %p131 = pneg %p87
        $region18: #{_rd_pallas_call.1} parent=11 // pred_check_branch
          %133 = sbr.rel (%p131) target = $region20
        $region19: #{_rd_pallas_call.1} parent=11 // pred_region
          _
        $region20: #{_rd_pallas_call.1} parent=11 // pred_fallthru
          _
      $region12: #{_rd_pallas_call.1} parent=5 // pred_fallthru
        _
      %p134 = scmp.lt.s32.totalorder %s19, 2
      // Predicated region
      $region21: #{_rd_pallas_call.1} parent=5 // pred_check
        %p135 = pneg %p134
      $region22: #{_rd_pallas_call.1} parent=5 // pred_check_branch
        %137 = sbr.rel (%p135) target = $region24
      $region23: #{_rd_pallas_call.1} parent=5 // pred_region
        // Predicated region
        $region25: #{_rd_pallas_call.1} parent=23 // pred_check
          %p138 = pneg %p39
        $region26: #{_rd_pallas_call.1} parent=23 // pred_check_branch
          %140 = sbr.rel (%p138) target = $region28
        $region27: #{_rd_pallas_call.1} parent=23 // pred_region
          %p141 = scmp.lt.s32.totalorder %s19, 1
          %s142 = scalar_select %p141, %s19, 1
          %s143 = smul.addr %s142, 2
          %s144 = smul.addr %s143, 8
          %s145 = scalar_lea.vmem %s1, %s144
        $region28: #{_rd_pallas_call.1} parent=23 // pred_fallthru
          _
      $region24: #{_rd_pallas_call.1} parent=5 // pred_fallthru
        _
      %p146 = scmp.le.s32.totalorder 1, %s19
      %p147 = scmp.lt.s32.totalorder %s19, 3
      %p148 = pnand %p146, %p147
      %p149 = pneg %p148
      // Predicated region
      $region29: #{_rd_pallas_call.1} parent=5 // pred_check
        _
      $region30: #{_rd_pallas_call.1} parent=5 // pred_check_branch
        %151 = sbr.rel (%p148) target = $region32
      $region31: #{_rd_pallas_call.1} parent=5 // pred_region
        %s152 = ssub.s32 %s19, 1
        %p153 = scmp.lt.s32.totalorder %s24, 1
        %s154 = scalar_select %p153, %s24, 1
        %s155 = smul.addr %s154, 2
        %s156 = smul.addr %s155, 8
        %s157 = scalar_lea.vmem %s1, %s156
        %p158 = pneg %p45
        %p159 = pneg %p42
        %p160 = pneg %p66
        %p161 = pneg %p63
        %p162 = pneg %p87
        %p163 = pneg %p84
        %p164 = pneg %p113
        %p165 = pneg %p110
        %s166 = sand.u32 %s100, 1
        %s167 = scalar_lea.sflag [#allocation5], %s166
        %s168 = sand.u32 %s100, 1
        %s169 = smul.addr %s168, 16
        %s170 = scalar_lea.vmem [#allocation4], %s169
        %p171 = scmp.lt.s32.totalorder %s24, 1
        %s172 = scalar_select %p171, %s24, 1
        %s173 = smul.addr %s172, 2
        %s174 = smul.addr %s173, 8
        %s175 = scalar_lea.vmem %s1, %s174
        %s176 = sld [smem:[#allocation3 + %s24]]
        %v177 = vld [vmem:[%s175] sm:$0xff]
        %v178 = vld [vmem:[%s175 + $0x8] sm:$0xff]
        %s179 = smul.u32 %s176, 32
        %s180 = scalar_lea.vmem %s2, %s179
        %v181 = vld [vmem:[%s180] sm:$0xff]
        %v182 = vld [vmem:[%s180 + $0x8] sm:$0xff]
        %v183 = vld [vmem:[%s180 + $0x10] sm:$0xff]
        %v184 = vld [vmem:[%s180 + $0x18] sm:$0xff]
        %s185 = scalar_lea.vmem %s3, %s179
        %v186 = vld [vmem:[%s185] sm:$0xff]
        %v187 = vld [vmem:[%s185 + $0x8] sm:$0xff]
        %v188 = vld [vmem:[%s185 + $0x10] sm:$0xff]
        %v189 = vld [vmem:[%s185 + $0x18] sm:$0xff]
        %191 = vset.pattern.permute.xlu0 0
        %192 = vperm.xlu0 %191, %v186
        %v193 = vpop.permute.xlu0 %192
        %196 = vset.pattern.permute.xlu0 0
        %197 = vperm.xlu0 %196, %v187
        %v198 = vpop.permute.xlu0 %197
        %201 = vset.pattern.permute.xlu0 0
        %202 = vperm.xlu0 %201, %v188
        %v203 = vpop.permute.xlu0 %202
        %206 = vset.pattern.permute.xlu0 0
        %207 = vperm.xlu0 %206, %v189
        %v208 = vpop.permute.xlu0 %207
        %vm210 = vcmask 130048
        %v212 = vsel %vm210, %v181, 0
        %v215 = vsel %vm210, %v182, 0
        %v218 = vsel %vm210, %v183, 0
        %v221 = vsel %vm210, %v184, 0
        %223 = vmatprep.subr.mxu0 0.0
        %224 = vmatpush1.msra.mxu0 %v177
        %225 = vmatprep.subr.mxu0 0.0
        %226 = vmatpush1.msra.mxu0 %v178
        %227 = vmatprep.subr.mxu0 0.0
        %228 = vmatpush1.msra.mxu0 0.0
        %229 = vmatprep.subr.mxu0 0.0
        %230 = vmatpush1.msra.mxu0 0.0
        %231 = vmatprep.subr.mxu0 0.0
        %232 = vmatpush1.msra.mxu0 0.0
        %233 = vmatprep.subr.mxu0 0.0
        %234 = vmatpush1.msra.mxu0 0.0
        %235 = vmatprep.subr.mxu0 0.0
        %236 = vmatpush1.msra.mxu0 0.0
        %237 = vmatprep.subr.mxu0 0.0
        %238 = vmatpush1.msra.mxu0 0.0
        %239 = vmatprep.subr.mxu0 0.0
        %240 = vmatpush1.msra.mxu0 0.0
        %241 = vmatprep.subr.mxu0 0.0
        %242 = vmatpush1.msra.mxu0 0.0
        %243 = vmatprep.subr.mxu0 0.0
        %244 = vmatpush1.msra.mxu0 0.0
        %245 = vmatprep.subr.mxu0 0.0
        %246 = vmatpush1.msra.mxu0 0.0
        %247 = vmatprep.subr.mxu0 0.0
        %248 = vmatpush1.msra.mxu0 0.0
        %249 = vmatprep.subr.mxu0 0.0
        %250 = vmatpush1.msra.mxu0 0.0
        %251 = vmatprep.subr.mxu0 0.0
        %252 = vmatpush1.msra.mxu0 0.0
        %253 = vmatprep.subr.mxu0 0.0
        %254 = vmatpush1.msra.mxu0 0.0
        %255 = vmatprep.subr.mxu0 0.0
        %256 = vmatpush1.msra.mxu0 0.0
        %257 = vmatprep.subr.mxu0 0.0
        %258 = vmatpush1.msra.mxu0 0.0
        %259 = vmatprep.subr.mxu0 0.0
        %260 = vmatpush1.msra.mxu0 0.0
        %261 = vmatprep.subr.mxu0 0.0
        %262 = vmatpush1.msra.mxu0 0.0
        %263 = vmatprep.subr.mxu0 0.0
        %264 = vmatpush1.msra.mxu0 0.0
        %265 = vmatprep.subr.mxu0 0.0
        %266 = vmatpush1.msra.mxu0 0.0
        %267 = vmatprep.subr.mxu0 0.0
        %268 = vmatpush1.msra.mxu0 0.0
        %269 = vmatprep.subr.mxu0 0.0
        %270 = vmatpush1.msra.mxu0 0.0
        %271 = vmatprep.subr.mxu0 0.0
        %272 = vmatpush1.msra.mxu0 0.0
        %273 = vmatprep.subr.mxu0 0.0
        %274 = vmatpush1.msra.mxu0 0.0
        %275 = vmatprep.subr.mxu0 0.0
        %276 = vmatpush1.msra.mxu0 0.0
        %277 = vmatprep.subr.mxu0 0.0
        %278 = vmatpush1.msra.mxu0 0.0
        %279 = vmatprep.subr.mxu0 0.0
        %280 = vmatpush1.msra.mxu0 0.0
        %281 = vmatprep.subr.mxu0 0.0
        %282 = vmatpush1.msra.mxu0 0.0
        %283 = vmatprep.subr.mxu0 0.0
        %284 = vmatpush1.msra.mxu0 0.0
        %285 = vmatprep.subr.mxu0 0.0
        %286 = vmatpush1.msra.mxu0 0.0
        %287 = vmatprep.mubr.f32.mxu0 0.0
        %288 = vmatmul.mubr.f32.gmra.mrb[0].mxu0 %v212
        %v289 = vpop.f32.mrb[0].mxu0
        %v290 = vadd.f32 %v193, %v289
        %v291 = vpop.f32.mrb[0].mxu0
        %292 = vmatprep.mubr.f32.mxu0 0.0
        %293 = vmatmul.mubr.f32.gmra.mrb[0].mxu0 %v215
        %v294 = vpop.f32.mrb[0].mxu0
        %v295 = vadd.f32 %v198, %v294
        %v296 = vpop.f32.mrb[0].mxu0
        %297 = vmatprep.mubr.f32.mxu0 0.0
        %298 = vmatmul.mubr.f32.gmra.mrb[0].mxu0 %v218
        %v299 = vpop.f32.mrb[0].mxu0
        %v300 = vadd.f32 %v203, %v299
        %v301 = vpop.f32.mrb[0].mxu0
        %302 = vmatprep.mubr.f32.mxu0 0.0
        %303 = vmatmul.mubr.f32.gmra.mrb[0].mxu0 %v221
        %v304 = vpop.f32.mrb[0].mxu0
        %v305 = vadd.f32 %v208, %v304
        %v306 = vpop.f32.mrb[0].mxu0
        %307 = vdwg.mxu0
        %v308 = vtanh.pop %v290
        %v309 = vtanh.pop %v295
        %v310 = vadd.f32 %v308, %v300
        %v311 = vadd.f32 %v309, %v305
        %v312 = vadd.f32 %v310, %v177
        %v313 = vadd.f32 %v311, %v178
        %314 = vst.msk [vmem:[%s170] sm:$0xff] %vm210, %v312
        %315 = vst.msk [vmem:[%s170 + $0x8] sm:$0xff] %vm210, %v313
        %s316 = sand.u32 %s100, 1
        %s317 = scalar_lea.sflag [#allocation5], %s316
        %s318 = sand.u32 %s100, 1
        %s319 = smul.addr %s318, 16
        %s320 = scalar_lea.vmem [#allocation4], %s319
        // Predicated region
        $region33: #{_rd_pallas_call.1} parent=31 // pred_check
          %p321 = pneg %p110
        $region34: #{_rd_pallas_call.1} parent=31 // pred_check_branch
          %323 = sbr.rel (%p321) target = $region36
        $region35: #{_rd_pallas_call.1} parent=31 // pred_region
          %s325 = ssub.s32 256, 256
          %326 = vsyncadd %s317, %s325
          %s327 = smul.addr %s24, 2
          %s328 = smul.addr %s327, 128
          %s329 = scalar_lea.hbm %s4, %s328
          %s330 = sshll.u32 %s320, 4
          %s331 = int_to_ptr.vmem [resolvable:$true] %s330
          %336 = dma.vmem_to_hbm [thread:$0]  %s331, 256, %s329, %s317, 128, 128, 8
        $region36: #{_rd_pallas_call.1} parent=31 // pred_fallthru
          _
      $region32: #{_rd_pallas_call.1} parent=5 // pred_fallthru
        _
      %p337 = scmp.le.s32.totalorder 2, %s19
      // Predicated region
      $region37: #{_rd_pallas_call.1} parent=5 // pred_check
        %p338 = pneg %p337
      $region38: #{_rd_pallas_call.1} parent=5 // pred_check_branch
        %340 = sbr.rel (%p338) target = $region40
      $region39: #{_rd_pallas_call.1} parent=5 // pred_region
        %s341 = ssub.s32 %s19, 2
        // Predicated region
        $region41: #{_rd_pallas_call.1} parent=39 // pred_check
          %p342 = pneg %p116
        $region42: #{_rd_pallas_call.1} parent=39 // pred_check_branch
          %344 = sbr.rel (%p342) target = $region44
        $region43: #{_rd_pallas_call.1} parent=39 // pred_region
          %s345 = sand.u32 %s101, 1
          %s346 = scalar_lea.sflag [#allocation5], %s345
          %s347 = sand.u32 %s101, 1
          %s348 = smul.addr %s347, 16
          %s349 = scalar_lea.vmem [#allocation4], %s348
          %350 = dma.done %s346, 256
        $region44: #{_rd_pallas_call.1} parent=39 // pred_fallthru
          _
      $region40: #{_rd_pallas_call.1} parent=5 // pred_fallthru
        _
    $region6: #{_rd_pallas_call.1} parent=1 // loop_footer
      %s23 = sadd.s32 1, %s19
    $region7: #{_rd_pallas_call.1} parent=1 // loop_footer_branch
      %18 = sbr.rel target = $region3
    $region8: #{_rd_pallas_call.1} parent=1 // loop_exit
      _
    %351 = vsyncpa [#allocation5], 1
    %s352 = scalar_lea.sflag [#allocation5], 1
    %353 = vsyncpa %s352, 1

</llo_original>
